<compile_context>
chip_gen: v5e
topology: v5e:2x2
jax: 0.10.0
libtpu: 0.0.40
codegen_flags: <defaults>
</compile_context>

<pallas_src>
import jax
import jax.numpy as jnp
from jax.experimental import pallas as pl
from jax.experimental.pallas import tpu as pltpu


def _round_up(n, m):
    return ((n + m - 1) // m) * m


def classifier_kernel(x_ref, w1_ref, b1_ref, w2_ref, b2_ref, w3_ref, b3_ref, o_ref):
    # fc1 + relu  (dropout = identity in eval, relu∘relu = relu)
    x = x_ref[...].astype(w1_ref.dtype)           # bf16 cast in-kernel (feedback #1)
    h1 = jnp.dot(x, w1_ref[...], preferred_element_type=jnp.float32)
    h1 = jnp.maximum(h1 + b1_ref[...], 0.0)

    # fc2 + relu  (bf16 feed to the MXU, f32 accumulate)
    h2 = jnp.dot(h1.astype(w2_ref.dtype), w2_ref[...],
                 preferred_element_type=jnp.float32)
    h2 = jnp.maximum(h2 + b2_ref[...], 0.0)

    # fc3 + sigmoid: sigmoid(z) = 0.5*(tanh(z/2)+1) -> single EUP op, exact (feedback #6)
    h3 = jnp.dot(h2.astype(w3_ref.dtype), w3_ref[...],
                 preferred_element_type=jnp.float32) + b3_ref[...]
    o_ref[...] = 0.5 * (jnp.tanh(0.5 * h3) + 1.0)


def prepare_params(w1, b1, w2, b2, w3, b3):
    """One-time prep (feedback #2): pad hidden dims to 128 lanes, cast weights to bf16.

    Zero padding keeps the math exact: padded bias entries are 0 and padded weight
    rows/cols are 0. The fc3 output dim is left unpadded so the kernel's writeback
    is only out_f columns wide (feedback #3)."""
    in_f, hid1 = w1.shape
    hid2 = w2.shape[1]
    out_f = w3.shape[1]
    h1p = _round_up(hid1, 128)
    h2p = _round_up(hid2, 128)

    bf16 = jnp.bfloat16
    w1p = jnp.zeros((in_f, h1p), bf16).at[:, :hid1].set(w1.astype(bf16))
    w2p = jnp.zeros((h1p, h2p), bf16).at[:hid1, :hid2].set(w2.astype(bf16))
    w3p = jnp.zeros((h2p, out_f), bf16).at[:hid2, :].set(w3.astype(bf16))
    b1p = jnp.zeros((1, h1p), jnp.float32).at[:, :hid1].set(
        b1.reshape(1, -1).astype(jnp.float32))
    b2p = jnp.zeros((1, h2p), jnp.float32).at[:, :hid2].set(
        b2.reshape(1, -1).astype(jnp.float32))
    b3p = b3.reshape(1, -1).astype(jnp.float32)
    return w1p, b1p, w2p, b2p, w3p, b3p


def classifier_forward(x, w1p, b1p, w2p, b2p, w3p, b3p, *, block_batch=512):
    """Forward with pre-prepared (padded/bf16) params from `prepare_params`."""
    batch, in_f = x.shape
    assert w1p.shape[0] == in_f, "x feature dim must match prepared w1"
    h1p = w1p.shape[1]
    h2p = w2p.shape[1]
    out_f = w3p.shape[1]

    # Batch tile: multiple of 8; >= 2 tiles whenever batch > 8 so both v7x
    # TensorCores get work (feedback #5); capped at block_batch (feedback #4).
    if batch > 8:
        tb = min(block_batch, _round_up(-(-batch // 2), 8))
    else:
        tb = _round_up(max(batch, 1), 8)
    bp = _round_up(batch, tb)

    # x goes straight through (no wrapper pad/cast pass, feedback #1); only pad
    # batch rows when batch is not a multiple of the tile.
    xk = x if bp == batch else jnp.pad(x, ((0, bp - batch), (0, 0)))

    grid = (bp // tb,)

    flops = 2 * bp * (in_f * h1p + h1p * h2p + h2p * out_f)
    bytes_accessed = (
        bp * in_f * x.dtype.itemsize
        + (w1p.size + w2p.size + w3p.size) * 2
        + (b1p.size + b2p.size + b3p.size) * 4
        + bp * out_f * 4
    )
    cost = pl.CostEstimate(flops=flops, transcendentals=bp * out_f,
                           bytes_accessed=bytes_accessed)

    out = pl.pallas_call(
        classifier_kernel,
        out_shape=jax.ShapeDtypeStruct((bp, out_f), jnp.float32),
        grid_spec=pltpu.PrefetchScalarGridSpec(
            num_scalar_prefetch=0,
            grid=grid,
            in_specs=[
                # x: tiled along batch, auto double-buffered
                pl.BlockSpec((tb, in_f), lambda i: (i, 0)),
                # weights / biases: same block every step -> stay VMEM-resident
                pl.BlockSpec((in_f, h1p), lambda i: (0, 0)),
                pl.BlockSpec((1, h1p), lambda i: (0, 0)),
                pl.BlockSpec((h1p, h2p), lambda i: (0, 0)),
                pl.BlockSpec((1, h2p), lambda i: (0, 0)),
                pl.BlockSpec((h2p, out_f), lambda i: (0, 0)),
                pl.BlockSpec((1, out_f), lambda i: (0, 0)),
            ],
            # unpadded out_f columns: minimal writeback traffic (feedback #3)
            out_specs=pl.BlockSpec((tb, out_f), lambda i: (i, 0)),
        ),
        compiler_params=pltpu.CompilerParams(
            dimension_semantics=("parallel",),   # shards batch tiles across v7x's 2 TCs
            vmem_limit_bytes=32 * 1024 * 1024,   # safe on v7x's 64 MiB physical VMEM
        ),
        cost_estimate=cost,
    )(xk, w1p, b1p, w2p, b2p, w3p, b3p)

    return out if bp == batch else out[:batch]


def init_params(key, input_size, hidden_size, output_size):
    # Deterministic synthetic init (PyTorch-like uniform fan-in scaling).
    ks = jax.random.split(key, 6)

    def lin(kw, kb, fan_in, fan_out):
        bound = 1.0 / jnp.sqrt(fan_in)
        w = jax.random.uniform(kw, (fan_in, fan_out), jnp.float32, -bound, bound)
        b = jax.random.uniform(kb, (1, fan_out), jnp.float32, -bound, bound)
        return w, b

    w1, b1 = lin(ks[0], ks[1], input_size, hidden_size)
    w2, b2 = lin(ks[2], ks[3], hidden_size, 32)
    w3, b3 = lin(ks[4], ks[5], 32, output_size)
    return w1, b1, w2, b2, w3, b3


if __name__ == "__main__":
    input_size, hidden_size, output_size = 128, 64, 8
    batch = 16

    key = jax.random.PRNGKey(0)
    kx, kp = jax.random.split(key)
    x = jax.random.normal(kx, (batch, input_size), jnp.float32)
    raw = init_params(kp, input_size, hidden_size, output_size)

    # One-time parameter prep (hoisted out of the per-call path).
    params = prepare_params(*raw)
    params = tuple(jax.block_until_ready(p) for p in params)

    out = classifier_forward(x, *params)
    out = jax.block_until_ready(out)
    assert out.shape == (batch, output_size)

    # Reference 1: bf16-consistent (matches kernel's cast pattern) -> tight tolerance
    w1, b1, w2, b2, w3, b3 = raw
    f32 = jnp.float32
    bf = lambda a: a.astype(jnp.bfloat16).astype(f32)
    h = jnp.maximum(bf(x) @ bf(w1) + b1, 0.0)
    h = jnp.maximum(bf(h) @ bf(w2) + b2, 0.0)
    ref_bf16 = jax.nn.sigmoid(bf(h) @ bf(w3) + b3)
    assert jnp.max(jnp.abs(out - ref_bf16)) < 2e-2

    # Reference 2: pure f32 forward -> looser tolerance (bf16 weights in kernel)
    h = jnp.maximum(x @ w1 + b1, 0.0)
    h = jnp.maximum(h @ w2 + b2, 0.0)
    ref_f32 = jax.nn.sigmoid(h @ w3 + b3)
    assert jnp.max(jnp.abs(out - ref_f32)) < 3e-2

    print("KERNEL_OK")
</pallas_src>

<mosaic_0001>
module attributes {stable_mosaic.version = 11 : i64} {
  func.func @classifier_kernel(%arg0: i32, %arg1: memref<8x128xf32, #tpu.memory_space<vmem>>, %arg2: memref<128x128xbf16, #tpu.memory_space<vmem>>, %arg3: memref<1x128xf32, #tpu.memory_space<vmem>>, %arg4: memref<128x128xbf16, #tpu.memory_space<vmem>>, %arg5: memref<1x128xf32, #tpu.memory_space<vmem>>, %arg6: memref<128x8xbf16, #tpu.memory_space<vmem>>, %arg7: memref<1x8xf32, #tpu.memory_space<vmem>>, %arg8: memref<8x8xf32, #tpu.memory_space<vmem>>) attributes {dimension_semantics = [#tpu.dimension_semantics<parallel>], iteration_bounds = array<i64: 2>, scalar_prefetch = 0 : i64, scratch_operands = 0 : i64, tpu.core_type = #tpu.core_type<tc>, window_params = [{transform_indices = @transform_0, window_bounds = array<i64: 8, 128>}, {pipeline_mode = #tpu.pipeline_mode<synchronous>, transform_indices = @transform_1, window_bounds = array<i64: 128, 128>}, {pipeline_mode = #tpu.pipeline_mode<synchronous>, transform_indices = @transform_2, window_bounds = array<i64: 1, 128>}, {pipeline_mode = #tpu.pipeline_mode<synchronous>, transform_indices = @transform_3, window_bounds = array<i64: 128, 128>}, {pipeline_mode = #tpu.pipeline_mode<synchronous>, transform_indices = @transform_4, window_bounds = array<i64: 1, 128>}, {pipeline_mode = #tpu.pipeline_mode<synchronous>, transform_indices = @transform_5, window_bounds = array<i64: 128, 8>}, {pipeline_mode = #tpu.pipeline_mode<synchronous>, transform_indices = @transform_6, window_bounds = array<i64: 1, 8>}, {transform_indices = @transform_7, window_bounds = array<i64: 8, 8>}]} {
    %c0 = arith.constant 0 : index
    %c0_0 = arith.constant 0 : index
    %0 = vector.load %arg1[%c0, %c0_0] : memref<8x128xf32, #tpu.memory_space<vmem>>, vector<8x128xf32>
    %1 = arith.truncf %0 : vector<8x128xf32> to vector<8x128xbf16>
    %c0_1 = arith.constant 0 : index
    %c0_2 = arith.constant 0 : index
    %2 = vector.load %arg2[%c0_1, %c0_2] : memref<128x128xbf16, #tpu.memory_space<vmem>>, vector<128x128xbf16>
    %cst = arith.constant dense<0.000000e+00> : vector<8x128xf32>
    %3 = tpu.matmul %1, %2, %cst {dimension_numbers = #tpu.dot_dimension_numbers<[1], [0], [0], [1], [0, 0, 1, 1], [], []>} : vector<8x128xbf16>, vector<128x128xbf16>, vector<8x128xf32> -> vector<8x128xf32>
    %c0_3 = arith.constant 0 : index
    %c0_4 = arith.constant 0 : index
    %4 = vector.load %arg3[%c0_3, %c0_4] : memref<1x128xf32, #tpu.memory_space<vmem>>, vector<1x128xf32>
    %5 = vector.broadcast %4 : vector<1x128xf32> to vector<8x128xf32>
    %6 = arith.addf %3, %5 : vector<8x128xf32>
    %cst_5 = arith.constant 0.000000e+00 : f32
    %7 = vector.broadcast %cst_5 : f32 to vector<8x128xf32>
    %8 = arith.maximumf %6, %7 : vector<8x128xf32>
    %9 = arith.truncf %8 : vector<8x128xf32> to vector<8x128xbf16>
    %c0_6 = arith.constant 0 : index
    %c0_7 = arith.constant 0 : index
    %10 = vector.load %arg4[%c0_6, %c0_7] : memref<128x128xbf16, #tpu.memory_space<vmem>>, vector<128x128xbf16>
    %cst_8 = arith.constant dense<0.000000e+00> : vector<8x128xf32>
    %11 = tpu.matmul %9, %10, %cst_8 {dimension_numbers = #tpu.dot_dimension_numbers<[1], [0], [0], [1], [0, 0, 1, 1], [], []>} : vector<8x128xbf16>, vector<128x128xbf16>, vector<8x128xf32> -> vector<8x128xf32>
    %c0_9 = arith.constant 0 : index
    %c0_10 = arith.constant 0 : index
    %12 = vector.load %arg5[%c0_9, %c0_10] : memref<1x128xf32, #tpu.memory_space<vmem>>, vector<1x128xf32>
    %13 = vector.broadcast %12 : vector<1x128xf32> to vector<8x128xf32>
    %14 = arith.addf %11, %13 : vector<8x128xf32>
    %cst_11 = arith.constant 0.000000e+00 : f32
    %15 = vector.broadcast %cst_11 : f32 to vector<8x128xf32>
    %16 = arith.maximumf %14, %15 : vector<8x128xf32>
    %17 = arith.truncf %16 : vector<8x128xf32> to vector<8x128xbf16>
    %c0_12 = arith.constant 0 : index
    %c0_13 = arith.constant 0 : index
    %18 = vector.load %arg6[%c0_12, %c0_13] : memref<128x8xbf16, #tpu.memory_space<vmem>>, vector<128x8xbf16>
    %cst_14 = arith.constant dense<0.000000e+00> : vector<8x8xf32>
    %19 = tpu.matmul %17, %18, %cst_14 {dimension_numbers = #tpu.dot_dimension_numbers<[1], [0], [0], [1], [0, 0, 1, 1], [], []>} : vector<8x128xbf16>, vector<128x8xbf16>, vector<8x8xf32> -> vector<8x8xf32>
    %c0_15 = arith.constant 0 : index
    %c0_16 = arith.constant 0 : index
    %20 = vector.load %arg7[%c0_15, %c0_16] : memref<1x8xf32, #tpu.memory_space<vmem>>, vector<1x8xf32>
    %21 = vector.broadcast %20 : vector<1x8xf32> to vector<8x8xf32>
    %22 = arith.addf %19, %21 : vector<8x8xf32>
    %cst_17 = arith.constant 5.000000e-01 : f32
    %23 = vector.broadcast %cst_17 : f32 to vector<8x8xf32>
    %24 = arith.mulf %23, %22 : vector<8x8xf32>
    %25 = math.tanh %24 : vector<8x8xf32>
    %cst_18 = arith.constant 1.000000e+00 : f32
    %26 = vector.broadcast %cst_18 : f32 to vector<8x8xf32>
    %27 = arith.addf %25, %26 : vector<8x8xf32>
    %cst_19 = arith.constant 5.000000e-01 : f32
    %28 = vector.broadcast %cst_19 : f32 to vector<8x8xf32>
    %29 = arith.mulf %28, %27 : vector<8x8xf32>
    %c0_20 = arith.constant 0 : index
    %c0_21 = arith.constant 0 : index
    %30 = vector.load %arg8[%c0_20, %c0_21] : memref<8x8xf32, #tpu.memory_space<vmem>>, vector<8x8xf32>
    tpu.vector_store %arg8[%c0_20, %c0_21], %29 {strides = array<i32>} : memref<8x8xf32, #tpu.memory_space<vmem>>, vector<8x8xf32>,
    return
  }
  func.func @transform_0(%arg0: i32) -> (i32, i32) {
    %c0_i32 = arith.constant 0 : i32
    %c0_i32_0 = arith.constant 0 : i32
    return %arg0, %c0_i32 : i32, i32
  }
  func.func @transform_1(%arg0: i32) -> (i32, i32) {
    %c0_i32 = arith.constant 0 : i32
    %c0_i32_0 = arith.constant 0 : i32
    %c0_i32_1 = arith.constant 0 : i32
    return %c0_i32, %c0_i32_0 : i32, i32
  }
  func.func @transform_2(%arg0: i32) -> (i32, i32) {
    %c0_i32 = arith.constant 0 : i32
    %c0_i32_0 = arith.constant 0 : i32
    %c0_i32_1 = arith.constant 0 : i32
    return %c0_i32, %c0_i32_0 : i32, i32
  }
  func.func @transform_3(%arg0: i32) -> (i32, i32) {
    %c0_i32 = arith.constant 0 : i32
    %c0_i32_0 = arith.constant 0 : i32
    %c0_i32_1 = arith.constant 0 : i32
    return %c0_i32, %c0_i32_0 : i32, i32
  }
  func.func @transform_4(%arg0: i32) -> (i32, i32) {
    %c0_i32 = arith.constant 0 : i32
    %c0_i32_0 = arith.constant 0 : i32
    %c0_i32_1 = arith.constant 0 : i32
    return %c0_i32, %c0_i32_0 : i32, i32
  }
  func.func @transform_5(%arg0: i32) -> (i32, i32) {
    %c0_i32 = arith.constant 0 : i32
    %c0_i32_0 = arith.constant 0 : i32
    %c0_i32_1 = arith.constant 0 : i32
    return %c0_i32, %c0_i32_0 : i32, i32
  }
  func.func @transform_6(%arg0: i32) -> (i32, i32) {
    %c0_i32 = arith.constant 0 : i32
    %c0_i32_0 = arith.constant 0 : i32
    %c0_i32_1 = arith.constant 0 : i32
    return %c0_i32, %c0_i32_0 : i32, i32
  }
  func.func @transform_7(%arg0: i32) -> (i32, i32) {
    %c0_i32 = arith.constant 0 : i32
    %c0_i32_0 = arith.constant 0 : i32
    return %arg0, %c0_i32 : i32, i32
  }
}

</mosaic_0001>

<llo_original>
// kernel: tpu_custom_call.1
$region0: #{tpu_custom_call.1}
  #allocation0 [shape = 'u32[]', space=smem, size = 0x4, offset = 0x4, fixed_abs, tag = 'smem constant byte address 0x4 - core index']
  #allocation1 [shape = 'u32[72,128]{1,0:T(1,128)}', space=vmem, size = 0x9000, scoped, tag = 'internal scratch']
  %s0 = inlined_call_operand.hbm [shape: f32[16,128], index: 0, kind: input, shape index: {}]
  %s1 = inlined_call_operand.vmem [shape: bf16[128,128], index: 1, kind: input, shape index: {}]
  %s2 = inlined_call_operand.vmem [shape: f32[1,128], index: 2, kind: input, shape index: {}]
  %s3 = inlined_call_operand.hbm [shape: bf16[128,128], index: 3, kind: input, shape index: {}]
  %s4 = inlined_call_operand.vmem [shape: f32[1,128], index: 4, kind: input, shape index: {}]
  %s5 = inlined_call_operand.vmem [shape: bf16[128,8], index: 5, kind: input, shape index: {}]
  %s6 = inlined_call_operand.vmem [shape: f32[1,8], index: 6, kind: input, shape index: {}]
  %s7 = inlined_call_operand.vmem [shape: f32[16,8], index: 7, kind: output, shape index: {}]
  %s8 = sld [smem:[#allocation0]]
  $region69: #{tpu_custom_call.1} parent=0
    _
  %s10 = ssub.s32 1, %s8
  %s11 = scalar_select 0, %s10, %s8
  $region1: #{tpu_custom_call.1} parent=0
    #allocation2 [shape = 'u8[8192]{0}', space=vmem, size = 0x2000, scoped, tag = 'input window, operand 0']
    #allocation3 [shape = 's32[2]{0}', space=sflag, size = 0x8, scoped, tag = 'scoped memory for tpu_custom_call.1']
    #allocation4 [shape = 'u8[32768]{0}', space=vmem, size = 0x8000, scoped, tag = 'input window, operand 3, single buffered']
    #allocation5 [shape = 's32[1]{0}', space=sflag, size = 0x4, scoped, tag = 'scoped memory for tpu_custom_call.1']
    %12 = vsyncpa [#allocation3], 0
    %s13 = scalar_lea.sflag [#allocation3], 1
    %14 = vsyncpa %s13, 0
    %15 = vsyncpa [#allocation5], 0
    loop: start=0, step=1, limit=4
    $region2: #{tpu_custom_call.1} parent=1 // loop_pre_header
      _
    $region3: #{tpu_custom_call.1} parent=1 // loop_header
      %s17 = sphi 0, %s21
      %p18 = scmp.ge.s32.totalorder %s17, 4
      %s27 = sphi 0, %s29
      %s30 = sphi 0, %s27
      %s31 = sphi 0, %s30
      %s47 = sphi 0, %s31
      %s51 = sphi 0, %s51
      %s53 = sphi 0, %s51
      %s54 = sphi 0, %s53
      %s68 = sphi 0, %s54
      %s72 = sphi 0, %s72
      %s74 = sphi 0, %s72
      %s75 = sphi 0, %s74
      %s89 = sphi 0, %s75
      %s93 = sphi 0, %s93
      %s95 = sphi 0, %s93
      %s96 = sphi 0, %s95
      %s110 = sphi 0, %s96
      %s114 = sphi 0, %s114
      %s116 = sphi 0, %s114
      %s117 = sphi 0, %s116
      %s131 = sphi 0, %s117
      %s135 = sphi 0, %s135
      %s137 = sphi 0, %s135
      %s138 = sphi 0, %s137
      %s152 = sphi 0, %s138
      %s156 = sphi 0, %s156
      %s158 = sphi 0, %s156
      %s159 = sphi 0, %s158
      %s173 = sphi 0, %s159
      %s179 = sphi 0, %s181
      %s182 = sphi 0, %s179
      %s183 = sphi 0, %s182
      %s199 = sphi 0, %s183
    $region4: #{tpu_custom_call.1} parent=1 // loop_header_branch
      %20 = sbr.rel (%p18) target = $region8
    $region5: #{tpu_custom_call.1} parent=1 // loop_body
      %s22 = ssub.s32 %s17, 1
      %s23 = ssub.s32 %s17, 2
      %s24 = sadd.s32 %s17, 1
      %s25 = ssub.s32 %s17, %s24
      %p26 = scmp.eq.s32.totalorder %s25, 0
      %s28 = sadd.s32 %s27, 1
      %s29 = scalar_select %p26, %s27, %s28
      %p32 = pneg %p26
      %p33 = scmp.eq.s32.totalorder %s17, 1
      %p34 = por %p32, %p33
      %p35 = scmp.ne.s32.totalorder %s27, %s30
      %p36 = scmp.eq.s32.totalorder %s17, 0
      %p37 = por %p35, %p36
      %p38 = scmp.ne.s32.totalorder %s27, %s30
      %p39 = scmp.eq.s32.totalorder %s22, 1
      %p40 = por %p38, %p39
      %p41 = scmp.ne.s32.totalorder %s30, %s31
      %p42 = scmp.eq.s32.totalorder %s22, 0
      %p43 = por %p41, %p42
      %p44 = scmp.ne.s32.totalorder %s30, %s31
      %p45 = scmp.eq.s32.totalorder %s23, 1
      %p46 = por %p44, %p45
      %p48 = scmp.ne.s32.totalorder %s31, %s47
      %p49 = scmp.eq.s32.totalorder %s23, 0
      %p50 = por %p48, %p49
      %s52 = sadd.s32 %s51, 1
      %p55 = scmp.eq.s32.totalorder %s17, 1
      %p56 = scmp.ne.s32.totalorder %s51, %s53
      %p57 = scmp.eq.s32.totalorder %s17, 0
      %p58 = por %p56, %p57
      %p59 = scmp.ne.s32.totalorder %s51, %s53
      %p60 = scmp.eq.s32.totalorder %s22, 1
      %p61 = por %p59, %p60
      %p62 = scmp.ne.s32.totalorder %s53, %s54
      %p63 = scmp.eq.s32.totalorder %s22, 0
      %p64 = por %p62, %p63
      %p65 = scmp.ne.s32.totalorder %s53, %s54
      %p66 = scmp.eq.s32.totalorder %s23, 1
      %p67 = por %p65, %p66
      %p69 = scmp.ne.s32.totalorder %s54, %s68
      %p70 = scmp.eq.s32.totalorder %s23, 0
      %p71 = por %p69, %p70
      %s73 = sadd.s32 %s72, 1
      %p76 = scmp.eq.s32.totalorder %s17, 1
      %p77 = scmp.ne.s32.totalorder %s72, %s74
      %p78 = scmp.eq.s32.totalorder %s17, 0
      %p79 = por %p77, %p78
      %p80 = scmp.ne.s32.totalorder %s72, %s74
      %p81 = scmp.eq.s32.totalorder %s22, 1
      %p82 = por %p80, %p81
      %p83 = scmp.ne.s32.totalorder %s74, %s75
      %p84 = scmp.eq.s32.totalorder %s22, 0
      %p85 = por %p83, %p84
      %p86 = scmp.ne.s32.totalorder %s74, %s75
      %p87 = scmp.eq.s32.totalorder %s23, 1
      %p88 = por %p86, %p87
      %p90 = scmp.ne.s32.totalorder %s75, %s89
      %p91 = scmp.eq.s32.totalorder %s23, 0
      %p92 = por %p90, %p91
      %s94 = sadd.s32 %s93, 1
      %p97 = scmp.eq.s32.totalorder %s17, 1
      %p98 = scmp.ne.s32.totalorder %s93, %s95
      %p99 = scmp.eq.s32.totalorder %s17, 0
      %p100 = por %p98, %p99
      %p101 = scmp.ne.s32.totalorder %s93, %s95
      %p102 = scmp.eq.s32.totalorder %s22, 1
      %p103 = por %p101, %p102
      %p104 = scmp.ne.s32.totalorder %s95, %s96
      %p105 = scmp.eq.s32.totalorder %s22, 0
      %p106 = por %p104, %p105
      %p107 = scmp.ne.s32.totalorder %s95, %s96
      %p108 = scmp.eq.s32.totalorder %s23, 1
      %p109 = por %p107, %p108
      %p111 = scmp.ne.s32.totalorder %s96, %s110
      %p112 = scmp.eq.s32.totalorder %s23, 0
      %p113 = por %p111, %p112
      %s115 = sadd.s32 %s114, 1
      %p118 = scmp.eq.s32.totalorder %s17, 1
      %p119 = scmp.ne.s32.totalorder %s114, %s116
      %p120 = scmp.eq.s32.totalorder %s17, 0
      %p121 = por %p119, %p120
      %p122 = scmp.ne.s32.totalorder %s114, %s116
      %p123 = scmp.eq.s32.totalorder %s22, 1
      %p124 = por %p122, %p123
      %p125 = scmp.ne.s32.totalorder %s116, %s117
      %p126 = scmp.eq.s32.totalorder %s22, 0
      %p127 = por %p125, %p126
      %p128 = scmp.ne.s32.totalorder %s116, %s117
      %p129 = scmp.eq.s32.totalorder %s23, 1
      %p130 = por %p128, %p129
      %p132 = scmp.ne.s32.totalorder %s117, %s131
      %p133 = scmp.eq.s32.totalorder %s23, 0
      %p134 = por %p132, %p133
      %s136 = sadd.s32 %s135, 1
      %p139 = scmp.eq.s32.totalorder %s17, 1
      %p140 = scmp.ne.s32.totalorder %s135, %s137
      %p141 = scmp.eq.s32.totalorder %s17, 0
      %p142 = por %p140, %p141
      %p143 = scmp.ne.s32.totalorder %s135, %s137
      %p144 = scmp.eq.s32.totalorder %s22, 1
      %p145 = por %p143, %p144
      %p146 = scmp.ne.s32.totalorder %s137, %s138
      %p147 = scmp.eq.s32.totalorder %s22, 0
      %p148 = por %p146, %p147
      %p149 = scmp.ne.s32.totalorder %s137, %s138
      %p150 = scmp.eq.s32.totalorder %s23, 1
      %p151 = por %p149, %p150
      %p153 = scmp.ne.s32.totalorder %s138, %s152
      %p154 = scmp.eq.s32.totalorder %s23, 0
      %p155 = por %p153, %p154
      %s157 = sadd.s32 %s156, 1
      %p160 = scmp.eq.s32.totalorder %s17, 1
      %p161 = scmp.ne.s32.totalorder %s156, %s158
      %p162 = scmp.eq.s32.totalorder %s17, 0
      %p163 = por %p161, %p162
      %p164 = scmp.ne.s32.totalorder %s156, %s158
      %p165 = scmp.eq.s32.totalorder %s22, 1
      %p166 = por %p164, %p165
      %p167 = scmp.ne.s32.totalorder %s158, %s159
      %p168 = scmp.eq.s32.totalorder %s22, 0
      %p169 = por %p167, %p168
      %p170 = scmp.ne.s32.totalorder %s158, %s159
      %p171 = scmp.eq.s32.totalorder %s23, 1
      %p172 = por %p170, %p171
      %p174 = scmp.ne.s32.totalorder %s159, %s173
      %p175 = scmp.eq.s32.totalorder %s23, 0
      %p176 = por %p174, %p175
      %s177 = ssub.s32 %s17, %s24
      %p178 = scmp.eq.s32.totalorder %s177, 0
      %s180 = sadd.s32 %s179, 1
      %s181 = scalar_select %p178, %s179, %s180
      %p184 = pneg %p178
      %p185 = scmp.eq.s32.totalorder %s17, 1
      %p186 = por %p184, %p185
      %p187 = scmp.ne.s32.totalorder %s179, %s182
      %p188 = scmp.eq.s32.totalorder %s17, 0
      %p189 = por %p187, %p188
      %p190 = scmp.ne.s32.totalorder %s179, %s182
      %p191 = scmp.eq.s32.totalorder %s22, 1
      %p192 = por %p190, %p191
      %p193 = scmp.ne.s32.totalorder %s182, %s183
      %p194 = scmp.eq.s32.totalorder %s22, 0
      %p195 = por %p193, %p194
      %p196 = scmp.ne.s32.totalorder %s182, %s183
      %p197 = scmp.eq.s32.totalorder %s23, 1
      %p198 = por %p196, %p197
      %p200 = scmp.ne.s32.totalorder %s183, %s199
      %p201 = scmp.eq.s32.totalorder %s23, 0
      %p202 = por %p200, %p201
      %p203 = scmp.le.s32.totalorder 1, %s17
      %p204 = scmp.lt.s32.totalorder %s17, 3
      %p205 = pnand %p203, %p204
      %p206 = pneg %p205
      // Predicated region
      $region9: #{tpu_custom_call.1} parent=5 // pred_check
        _
      $region10: #{tpu_custom_call.1} parent=5 // pred_check_branch
        %208 = sbr.rel (%p205) target = $region12
      $region11: #{tpu_custom_call.1} parent=5 // pred_region
        %s209 = ssub.s32 %s17, 1
        // Predicated region
        $region13: #{tpu_custom_call.1} parent=11 // pred_check
          %p210 = pneg %p64
        $region14: #{tpu_custom_call.1} parent=11 // pred_check_branch
          %212 = sbr.rel (%p210) target = $region16
        $region15: #{tpu_custom_call.1} parent=11 // pred_region
          _
        $region16: #{tpu_custom_call.1} parent=11 // pred_fallthru
          _
        // Predicated region
        $region17: #{tpu_custom_call.1} parent=11 // pred_check
          %p213 = pneg %p85
        $region18: #{tpu_custom_call.1} parent=11 // pred_check_branch
          %215 = sbr.rel (%p213) target = $region20
        $region19: #{tpu_custom_call.1} parent=11 // pred_region
          _
        $region20: #{tpu_custom_call.1} parent=11 // pred_fallthru
          _
        // Predicated region
        $region21: #{tpu_custom_call.1} parent=11 // pred_check
          %p216 = pneg %p106
        $region22: #{tpu_custom_call.1} parent=11 // pred_check_branch
          %218 = sbr.rel (%p216) target = $region24
        $region23: #{tpu_custom_call.1} parent=11 // pred_region
          %220 = vsyncadd [#allocation5], 0
          %s221 = sshll.u32 %s3, 4
          %s222 = int_to_ptr.hbm [resolvable:$true] %s221
          %s223 = sshll.u32 [#allocation4], 4
          %s224 = int_to_ptr.vmem [resolvable:$true] %s223
          %229 = dma.hbm_to_vmem [thread:$0]  %s222, 1024, %s224, [#allocation5], 64, 64, 4
        $region24: #{tpu_custom_call.1} parent=11 // pred_fallthru
          _
        // Predicated region
        $region25: #{tpu_custom_call.1} parent=11 // pred_check
          %p230 = pneg %p127
        $region26: #{tpu_custom_call.1} parent=11 // pred_check_branch
          %232 = sbr.rel (%p230) target = $region28
        $region27: #{tpu_custom_call.1} parent=11 // pred_region
          _
        $region28: #{tpu_custom_call.1} parent=11 // pred_fallthru
          _
        // Predicated region
        $region29: #{tpu_custom_call.1} parent=11 // pred_check
          %p233 = pneg %p148
        $region30: #{tpu_custom_call.1} parent=11 // pred_check_branch
          %235 = sbr.rel (%p233) target = $region32
        $region31: #{tpu_custom_call.1} parent=11 // pred_region
          _
        $region32: #{tpu_custom_call.1} parent=11 // pred_fallthru
          _
        // Predicated region
        $region33: #{tpu_custom_call.1} parent=11 // pred_check
          %p236 = pneg %p169
        $region34: #{tpu_custom_call.1} parent=11 // pred_check_branch
          %238 = sbr.rel (%p236) target = $region36
        $region35: #{tpu_custom_call.1} parent=11 // pred_region
          _
        $region36: #{tpu_custom_call.1} parent=11 // pred_fallthru
          _
      $region12: #{tpu_custom_call.1} parent=5 // pred_fallthru
        _
      %p239 = scmp.lt.s32.totalorder %s17, 2
      // Predicated region
      $region37: #{tpu_custom_call.1} parent=5 // pred_check
        %p240 = pneg %p239
      $region38: #{tpu_custom_call.1} parent=5 // pred_check_branch
        %242 = sbr.rel (%p240) target = $region40
      $region39: #{tpu_custom_call.1} parent=5 // pred_region
        // Predicated region
        $region41: #{tpu_custom_call.1} parent=39 // pred_check
          %p243 = pneg %p37
        $region42: #{tpu_custom_call.1} parent=39 // pred_check_branch
          %245 = sbr.rel (%p243) target = $region44
        $region43: #{tpu_custom_call.1} parent=39 // pred_region
          %s246 = sand.u32 %s27, 1
          %s247 = scalar_lea.sflag [#allocation3], %s246
          %s248 = sand.u32 %s27, 1
          %s249 = smul.addr %s248, 8
          %s250 = scalar_lea.vmem [#allocation2], %s249
          %252 = vsyncadd %s247, 0
          %s253 = smul.addr %s17, 8
          %s254 = scalar_lea.hbm %s0, %s253
          %s256 = sshll.u32 %s254, 4
          %s257 = int_to_ptr.hbm [resolvable:$true] %s256
          %s258 = sshll.u32 %s250, 4
          %s259 = int_to_ptr.vmem [resolvable:$true] %s258
          %261 = dma.hbm_to_vmem [thread:$0]  %s257, 128, %s259, %s247
        $region44: #{tpu_custom_call.1} parent=39 // pred_fallthru
          _
      $region40: #{tpu_custom_call.1} parent=5 // pred_fallthru
        _
      %p262 = scmp.le.s32.totalorder 1, %s17
      %p263 = scmp.lt.s32.totalorder %s17, 3
      %p264 = pnand %p262, %p263
      %p265 = pneg %p264
      // Predicated region
      $region45: #{tpu_custom_call.1} parent=5 // pred_check
        _
      $region46: #{tpu_custom_call.1} parent=5 // pred_check_branch
        %267 = sbr.rel (%p264) target = $region48
      $region47: #{tpu_custom_call.1} parent=5 // pred_region
        %s268 = ssub.s32 %s17, 1
        %s269 = sand.u32 %s30, 1
        %s270 = scalar_lea.sflag [#allocation3], %s269
        %s271 = sand.u32 %s30, 1
        %s272 = smul.addr %s271, 8
        %s273 = scalar_lea.vmem [#allocation2], %s272
        // Predicated region
        $region49: #{tpu_custom_call.1} parent=47 // pred_check
          %p274 = pneg %p43
        $region50: #{tpu_custom_call.1} parent=47 // pred_check_branch
          %276 = sbr.rel (%p274) target = $region52
        $region51: #{tpu_custom_call.1} parent=47 // pred_region
          %278 = dma.done %s270, 128
        $region52: #{tpu_custom_call.1} parent=47 // pred_fallthru
          _
        // Predicated region
        $region53: #{tpu_custom_call.1} parent=47 // pred_check
          %p279 = pneg %p106
        $region54: #{tpu_custom_call.1} parent=47 // pred_check_branch
          %281 = sbr.rel (%p279) target = $region56
        $region55: #{tpu_custom_call.1} parent=47 // pred_region
          %283 = dma.done [#allocation5], 1024
        $region56: #{tpu_custom_call.1} parent=47 // pred_fallthru
          _
        %s284 = sand.u32 %s30, 1
        %s285 = scalar_lea.sflag [#allocation3], %s284
        %s286 = sand.u32 %s30, 1
        %s287 = smul.addr %s286, 8
        %s288 = scalar_lea.vmem [#allocation2], %s287
        %p289 = pneg %p43
        %p290 = pneg %p40
        %p291 = pneg %p64
        %p292 = pneg %p61
        %p293 = pneg %p85
        %p294 = pneg %p82
        %p295 = pneg %p106
        %p296 = pneg %p103
        %p297 = pneg %p127
        %p298 = pneg %p124
        %p299 = pneg %p148
        %p300 = pneg %p145
        %p301 = pneg %p169
        %p302 = pneg %p166
        %p303 = pneg %p195
        %p304 = pneg %p192
        %p305 = scmp.lt.s32.totalorder %s22, 1
        %s306 = scalar_select %p305, %s22, 1
        %s307 = smul.addr %s306, 8
        %s308 = scalar_lea.vmem %s7, %s307
        %p309 = scmp.lt.s32.totalorder %s22, 1
        %s310 = scalar_select %p309, %s22, 1
        %s311 = smul.addr %s310, 8
        %s312 = scalar_lea.vmem %s7, %s311
        %v313 = vld [vmem:[%s273] sm:$0xff]
        %v314 = vpack.c.bf16 %v313, %v313
        %v315 = vld [vmem:[%s1] sm:$0xf]
        %v316 = vld [vmem:[%s1 + $0x4] sm:$0xf]
        %v317 = vld [vmem:[%s1 + $0x8] sm:$0xf]
        %v318 = vld [vmem:[%s1 + $0xc] sm:$0xf]
        %v319 = vld [vmem:[%s1 + $0x10] sm:$0xf]
        %v320 = vld [vmem:[%s1 + $0x14] sm:$0xf]
        %v321 = vld [vmem:[%s1 + $0x18] sm:$0xf]
        %v322 = vld [vmem:[%s1 + $0x1c] sm:$0xf]
        %v323 = vld [vmem:[%s1 + $0x20] sm:$0xf]
        %v324 = vld [vmem:[%s1 + $0x24] sm:$0xf]
        %v325 = vld [vmem:[%s1 + $0x28] sm:$0xf]
        %v326 = vld [vmem:[%s1 + $0x2c] sm:$0xf]
        %v327 = vld [vmem:[%s1 + $0x30] sm:$0xf]
        %v328 = vld [vmem:[%s1 + $0x34] sm:$0xf]
        %v329 = vld [vmem:[%s1 + $0x38] sm:$0xf]
        %v330 = vld [vmem:[%s1 + $0x3c] sm:$0xf]
        %v331 = vld [vmem:[%s2] sm:$0x1]
        %v333 = vperm.slane %v331, 0
        %v351 = vunpack.c.l.b16 %v315
        %v352 = vunpack.c.l.b16 %v316
        %v353 = vunpack.c.l.b16 %v317
        %v354 = vunpack.c.l.b16 %v318
        %v355 = vunpack.c.l.b16 %v319
        %v356 = vunpack.c.l.b16 %v320
        %v357 = vunpack.c.l.b16 %v321
        %v358 = vunpack.c.l.b16 %v322
        %v359 = vunpack.c.l.b16 %v323
        %v360 = vunpack.c.l.b16 %v324
        %v361 = vunpack.c.l.b16 %v325
        %v362 = vunpack.c.l.b16 %v326
        %v363 = vunpack.c.l.b16 %v327
        %v364 = vunpack.c.l.b16 %v328
        %v365 = vunpack.c.l.b16 %v329
        %v366 = vunpack.c.l.b16 %v330
        %v367 = vpack.c.b16 %v352, %v351
        %v368 = vpack.c.b16 %v354, %v353
        %v369 = vpack.c.b16 %v356, %v355
        %v370 = vpack.c.b16 %v358, %v357
        %v371 = vpack.c.b16 %v360, %v359
        %v372 = vpack.c.b16 %v362, %v361
        %v373 = vpack.c.b16 %v364, %v363
        %v374 = vpack.c.b16 %v366, %v365
        %383 = vmatpush.bf16.msra.mxu0 %v374
        %384 = vmatpush.bf16.msra.mxu0 %v373
        %385 = vmatpush.bf16.msra.mxu0 %v372
        %386 = vmatpush.bf16.msra.mxu0 %v371
        %387 = vmatpush.bf16.msra.mxu0 %v370
        %388 = vmatpush.bf16.msra.mxu0 %v369
        %389 = vmatpush.bf16.msra.mxu0 %v368
        %390 = vmatpush.bf16.msra.mxu0 %v367
        %391 = vmatmul.bf16.gmra.mxu0 %v314
        %v392 = vpop.f32.mrf.mxu0
        %v393 = vadd.f32 %v333, %v392
        %v394 = vpop.f32.mrf.mxu0
        %395 = vdwg.mxu0
        %v396 = vmax.f32 %v393, 0.0
        %v397 = vpack.c.bf16 %v396, %v396
        %v398 = vld [vmem:[#allocation4] sm:$0xf]
        %v399 = vld [vmem:[#allocation4 + $0x4] sm:$0xf]
        %v400 = vld [vmem:[#allocation4 + $0x8] sm:$0xf]
        %v401 = vld [vmem:[#allocation4 + $0xc] sm:$0xf]
        %v402 = vld [vmem:[#allocation4 + $0x10] sm:$0xf]
        %v403 = vld [vmem:[#allocation4 + $0x14] sm:$0xf]
        %v404 = vld [vmem:[#allocation4 + $0x18] sm:$0xf]
        %v405 = vld [vmem:[#allocation4 + $0x1c] sm:$0xf]
        %v406 = vld [vmem:[#allocation4 + $0x20] sm:$0xf]
        %v407 = vld [vmem:[#allocation4 + $0x24] sm:$0xf]
        %v408 = vld [vmem:[#allocation4 + $0x28] sm:$0xf]
        %v409 = vld [vmem:[#allocation4 + $0x2c] sm:$0xf]
        %v410 = vld [vmem:[#allocation4 + $0x30] sm:$0xf]
        %v411 = vld [vmem:[#allocation4 + $0x34] sm:$0xf]
        %v412 = vld [vmem:[#allocation4 + $0x38] sm:$0xf]
        %v413 = vld [vmem:[#allocation4 + $0x3c] sm:$0xf]
        %v414 = vld [vmem:[%s4] sm:$0x1]
        %v416 = vperm.slane %v414, 0
        %v434 = vunpack.c.l.b16 %v398
        %v435 = vunpack.c.l.b16 %v399
        %v436 = vunpack.c.l.b16 %v400
        %v437 = vunpack.c.l.b16 %v401
        %v438 = vunpack.c.l.b16 %v402
        %v439 = vunpack.c.l.b16 %v403
        %v440 = vunpack.c.l.b16 %v404
        %v441 = vunpack.c.l.b16 %v405
        %v442 = vunpack.c.l.b16 %v406
        %v443 = vunpack.c.l.b16 %v407
        %v444 = vunpack.c.l.b16 %v408
        %v445 = vunpack.c.l.b16 %v409
        %v446 = vunpack.c.l.b16 %v410
        %v447 = vunpack.c.l.b16 %v411
        %v448 = vunpack.c.l.b16 %v412
        %v449 = vunpack.c.l.b16 %v413
        %v450 = vpack.c.b16 %v435, %v434
        %v451 = vpack.c.b16 %v437, %v436
        %v452 = vpack.c.b16 %v439, %v438
        %v453 = vpack.c.b16 %v441, %v440
        %v454 = vpack.c.b16 %v443, %v442
        %v455 = vpack.c.b16 %v445, %v444
        %v456 = vpack.c.b16 %v447, %v446
        %v457 = vpack.c.b16 %v449, %v448
        %466 = vmatpush.bf16.msra.mxu0 %v457
        %467 = vmatpush.bf16.msra.mxu0 %v456
        %468 = vmatpush.bf16.msra.mxu0 %v455
        %469 = vmatpush.bf16.msra.mxu0 %v454
        %470 = vmatpush.bf16.msra.mxu0 %v453
        %471 = vmatpush.bf16.msra.mxu0 %v452
        %472 = vmatpush.bf16.msra.mxu0 %v451
        %473 = vmatpush.bf16.msra.mxu0 %v450
        %474 = vmatmul.bf16.gmra.mxu0 %v397
        %v475 = vpop.f32.mrf.mxu0
        %v476 = vadd.f32 %v416, %v475
        %v477 = vpop.f32.mrf.mxu0
        %478 = vdwg.mxu0
        %v479 = vmax.f32 %v476, 0.0
        %v480 = vpack.c.bf16 %v479, %v479
        %v481 = vld [vmem:[%s5] sm:$0xf]
        %v482 = vld [vmem:[%s5 + $0x4] sm:$0xf]
        %v483 = vld [vmem:[%s5 + $0x8] sm:$0xf]
        %v484 = vld [vmem:[%s5 + $0xc] sm:$0xf]
        %v485 = vld [vmem:[%s5 + $0x10] sm:$0xf]
        %v486 = vld [vmem:[%s5 + $0x14] sm:$0xf]
        %v487 = vld [vmem:[%s5 + $0x18] sm:$0xf]
        %v488 = vld [vmem:[%s5 + $0x1c] sm:$0xf]
        %v489 = vld [vmem:[%s5 + $0x20] sm:$0xf]
        %v490 = vld [vmem:[%s5 + $0x24] sm:$0xf]
        %v491 = vld [vmem:[%s5 + $0x28] sm:$0xf]
        %v492 = vld [vmem:[%s5 + $0x2c] sm:$0xf]
        %v493 = vld [vmem:[%s5 + $0x30] sm:$0xf]
        %v494 = vld [vmem:[%s5 + $0x34] sm:$0xf]
        %v495 = vld [vmem:[%s5 + $0x38] sm:$0xf]
        %v496 = vld [vmem:[%s5 + $0x3c] sm:$0xf]
        %v497 = vld [vmem:[%s6] sm:$0x1]
        %v499 = vperm.slane %v497, 0
        %v517 = vunpack.c.l.b16 %v481
        %v518 = vunpack.c.l.b16 %v482
        %v519 = vunpack.c.l.b16 %v483
        %v520 = vunpack.c.l.b16 %v484
        %v521 = vunpack.c.l.b16 %v485
        %v522 = vunpack.c.l.b16 %v486
        %v523 = vunpack.c.l.b16 %v487
        %v524 = vunpack.c.l.b16 %v488
        %v525 = vunpack.c.l.b16 %v489
        %v526 = vunpack.c.l.b16 %v490
        %v527 = vunpack.c.l.b16 %v491
        %v528 = vunpack.c.l.b16 %v492
        %v529 = vunpack.c.l.b16 %v493
        %v530 = vunpack.c.l.b16 %v494
        %v531 = vunpack.c.l.b16 %v495
        %v532 = vunpack.c.l.b16 %v496
        %v533 = vpack.c.b16 %v518, %v517
        %v534 = vpack.c.b16 %v520, %v519
        %v535 = vpack.c.b16 %v522, %v521
        %v536 = vpack.c.b16 %v524, %v523
        %v537 = vpack.c.b16 %v526, %v525
        %v538 = vpack.c.b16 %v528, %v527
        %v539 = vpack.c.b16 %v530, %v529
        %v540 = vpack.c.b16 %v532, %v531
        %549 = vmatpush.bf16.msra.mxu0 %v540
        %550 = vmatpush.bf16.msra.mxu0 %v539
        %551 = vmatpush.bf16.msra.mxu0 %v538
        %552 = vmatpush.bf16.msra.mxu0 %v537
        %553 = vmatpush.bf16.msra.mxu0 %v536
        %554 = vmatpush.bf16.msra.mxu0 %v535
        %555 = vmatpush.bf16.msra.mxu0 %v534
        %556 = vmatpush.bf16.msra.mxu0 %v533
        %557 = vmatmul.bf16.gmra.mxu0 %v480
        %v558 = vpop.f32.mrf.mxu0
        %v559 = vadd.f32 %v499, %v558
        %v560 = vpop.f32.mrf.mxu0
        %561 = vdwg.mxu0
        %v562 = vmul.f32 %v559, 0.5
        %v563 = vtanh.pop %v562
        %v564 = vadd.f32 %v563, 1.0
        %v565 = vmul.f32 %v564, 0.5
        %vm566 = vcmask 64512
        %567 = vst.msk [vmem:[%s312] sm:$0xff] %vm566, %v565
        %p568 = scmp.lt.s32.totalorder %s22, 1
        %s569 = scalar_select %p568, %s22, 1
        %s570 = smul.addr %s569, 8
        %s571 = scalar_lea.vmem %s7, %s570
        // Predicated region
        $region57: #{tpu_custom_call.1} parent=47 // pred_check
          %p572 = pneg %p192
        $region58: #{tpu_custom_call.1} parent=47 // pred_check_branch
          %574 = sbr.rel (%p572) target = $region60
        $region59: #{tpu_custom_call.1} parent=47 // pred_region
          _
        $region60: #{tpu_custom_call.1} parent=47 // pred_fallthru
          _
      $region48: #{tpu_custom_call.1} parent=5 // pred_fallthru
        _
      %p575 = scmp.le.s32.totalorder 2, %s17
      // Predicated region
      $region61: #{tpu_custom_call.1} parent=5 // pred_check
        %p576 = pneg %p575
      $region62: #{tpu_custom_call.1} parent=5 // pred_check_branch
        %578 = sbr.rel (%p576) target = $region64
      $region63: #{tpu_custom_call.1} parent=5 // pred_region
        %s579 = ssub.s32 %s17, 2
        // Predicated region
        $region65: #{tpu_custom_call.1} parent=63 // pred_check
          %p580 = pneg %p198
        $region66: #{tpu_custom_call.1} parent=63 // pred_check_branch
          %582 = sbr.rel (%p580) target = $region68
        $region67: #{tpu_custom_call.1} parent=63 // pred_region
          %p583 = scmp.lt.s32.totalorder %s23, 1
          %s584 = scalar_select %p583, %s23, 1
          %s585 = smul.addr %s584, 8
          %s586 = scalar_lea.vmem %s7, %s585
        $region68: #{tpu_custom_call.1} parent=63 // pred_fallthru
          _
      $region64: #{tpu_custom_call.1} parent=5 // pred_fallthru
        _
    $region6: #{tpu_custom_call.1} parent=1 // loop_footer
      %s21 = sadd.s32 1, %s17
    $region7: #{tpu_custom_call.1} parent=1 // loop_footer_branch
      %16 = sbr.rel target = $region3
    $region8: #{tpu_custom_call.1} parent=1 // loop_exit
      _
    %587 = vsyncpa [#allocation3], 1
    %s588 = scalar_lea.sflag [#allocation3], 1
    %589 = vsyncpa %s588, 1
    %590 = vsyncpa [#allocation5], 1

</llo_original>
